<compile_context>
chip_gen: v6e
topology: v6e:2x2x1
jax: 0.10.0
libtpu: 0.0.40
codegen_flags: <defaults>
</compile_context>

<pallas_src>
import numpy as np
import jax
import jax.numpy as jnp
from jax import lax
from jax.experimental import pallas as pl
from jax.experimental.pallas import tpu as pltpu


def build_conv_weight(weight: np.ndarray) -> np.ndarray:
    """Replicates RGBgradients.__init__: weight (2, kh, kw) -> (6, 3, kh, kw)."""
    kh, kw = weight.shape[1:]
    w = np.zeros((6, 3, kh, kw), dtype=np.float32)
    for c in range(3):
        w[2 * c + 0, c] = weight[0]   # x-gradient filter on channel c
        w[2 * c + 1, c] = weight[1]   # y-gradient filter on channel c
    return w


def _round_up(v, m):
    return -(-v // m) * m


def _vmem_budget_bytes():
    """Half of this generation's physical VMEM (fallback: 32 MiB)."""
    cap = None
    try:
        cap = getattr(pltpu.get_tpu_info(), "vmem_capacity_bytes", None)
    except Exception:
        cap = None
    if not cap:
        cap = 64 * 1024 * 1024        # conservative (v7x per-core VMEM)
    return int(max(16 * 1024 * 1024, cap // 2))


def _pick_tile_h(H, W, C, OC, ph, pw, in_bytes, budget_bytes, prefer_even_split):
    """Largest H tile (any multiple of 8 dividing H, or full H) fitting the budget.

    Budget accounts for double-buffered input/halo/output blocks, the padded slab,
    accumulators and shifted-tap temporaries, all at vreg-padded (8,128) sizes.
    """
    cands = sorted({t for t in range(8, H + 1, 8) if H % t == 0} | {H}, reverse=True)
    hb = 8
    use_roll = (W % 128 == 0)
    Wp = _round_up(W, 128)
    slab_wp = Wp if use_roll else _round_up(W + 2 * pw, 128)

    def fits(t):
        tp = _round_up(t, 8)
        n_tiles = H // t
        in_b = 2 * C * tp * Wp * in_bytes                       # main block (x2 buffers)
        halo_b = (2 * 2 * C * hb * Wp * in_bytes) if n_tiles > 1 else 0
        out_b = 2 * OC * tp * Wp * 4                            # output block (x2 buffers)
        slab_b = C * _round_up(t + 2 * ph, 8) * slab_wp * 4
        tmp_b = 8 * tp * Wp * 4                                 # acc_x/acc_y/tap/roll/mask temps
        return in_b + halo_b + out_b + slab_b + tmp_b <= budget_bytes

    fitting = [t for t in cands if fits(t)]
    if not fitting:
        return cands[-1]
    if prefer_even_split:
        even = [t for t in fitting if (H // t) % 2 == 0]
        if even:
            return even[0]
    return fitting[0]


def _make_kernel(C, OC, KH, KW, tH, W, ph, pw, hb, nH, wx, wy, use_roll):
    """Builds the kernel body. Weights wx/wy are Python float constants."""
    halo = nH > 1
    c0 = 0 if use_roll else pw                       # column offset of real data in the slab

    # (di, dj) taps that are nonzero for at least one of the two filters (shared plane).
    taps = [(di, dj) for di in range(KH) for dj in range(KW)
            if wx[di][dj] != 0.0 or wy[di][dj] != 0.0]

    def scaled(v, w):
        if w == 1.0:
            return v
        if w == -1.0:
            return -v
        return w * v

    def body(xm_ref, xt_ref, xb_ref, o_ref, slab):
        xin = xm_ref[0].astype(jnp.float32)          # (C, tH, W) — in-kernel cast

        # ---- assemble the H-padded slab; only the border is explicitly zeroed ----
        if use_roll:
            slab[:, ph:ph + tH, :] = xin
        else:
            # left/right zero-padding columns (tiny: pw columns each)
            zcols = jnp.zeros((C, tH + 2 * ph, pw), jnp.float32)
            slab[:, :, 0:pw] = zcols
            slab[:, :, pw + W:pw + W + pw] = zcols
            slab[:, ph:ph + tH, pw:pw + W] = xin

        zrows = jnp.zeros((C, ph, W), jnp.float32)
        if halo:
            h = pl.program_id(1)

            @pl.when(h == 0)
            def _():
                slab[:, 0:ph, c0:c0 + W] = zrows

            @pl.when(h > 0)
            def _():
                slab[:, 0:ph, c0:c0 + W] = xt_ref[0, :, hb - ph:hb, :].astype(jnp.float32)

            @pl.when(h == nH - 1)
            def _():
                slab[:, ph + tH:ph + tH + ph, c0:c0 + W] = zrows

            @pl.when(h < nH - 1)
            def _():
                slab[:, ph + tH:ph + tH + ph, c0:c0 + W] = xb_ref[0, :, 0:ph, :].astype(jnp.float32)
        else:
            slab[:, 0:ph, c0:c0 + W] = zrows
            slab[:, ph + tH:ph + tH + ph, c0:c0 + W] = zrows

        # ---- hoisted column masks for the roll path (one per used dj != pw) ----
        col_mask = {}
        if use_roll:
            col = lax.broadcasted_iota(jnp.int32, (tH, W), 1)
            for dj in sorted({dj for (_, dj) in taps if dj != pw}):
                dh = dj - pw
                col_mask[dj] = (col >= -dh) if dh < 0 else (col < W - dh)

        def tap_plane(band, dj):
            dh = dj - pw
            if use_roll:
                if dh == 0:
                    return band
                rolled = pltpu.roll(band, (-dh) % W, axis=1)     # XLU lane rotate
                return jnp.where(col_mask[dj], rolled, 0.0)
            return band[:, dj:dj + W]

        # ---- block-sparse conv: output channel 2*c+d depends only on input channel c ----
        for c in range(C):
            acc_x = None
            acc_y = None
            for di in range(KH):
                row_djs = [dj for (d2, dj) in taps if d2 == di]
                if not row_djs:
                    continue                                      # whole band statically zero
                band = slab[c, di:di + tH, :]
                for dj in row_djs:
                    t = tap_plane(band, dj)                       # shared by both filters
                    wxv, wyv = wx[di][dj], wy[di][dj]
                    if wxv != 0.0:
                        acc_x = scaled(t, wxv) if acc_x is None else acc_x + scaled(t, wxv)
                    if wyv != 0.0:
                        acc_y = scaled(t, wyv) if acc_y is None else acc_y + scaled(t, wyv)
            if acc_x is None:
                acc_x = jnp.zeros((tH, W), jnp.float32)
            if acc_y is None:
                acc_y = jnp.zeros((tH, W), jnp.float32)
            o_ref[0, 2 * c + 0, :, :] = acc_x.astype(o_ref.dtype)
            o_ref[0, 2 * c + 1, :, :] = acc_y.astype(o_ref.dtype)

    if halo:
        def kernel(xm_ref, xt_ref, xb_ref, o_ref, slab):
            body(xm_ref, xt_ref, xb_ref, o_ref, slab)
    else:
        def kernel(xm_ref, o_ref, slab):
            body(xm_ref, None, None, o_ref, slab)
    return kernel


def rgb_gradients(x: jax.Array, grad_filters, tile_h=None) -> jax.Array:
    """Forward pass of RGBgradients: 3->6 channel 'same' conv, no bias, NCHW."""
    N, C, H, W = x.shape
    gf = np.asarray(jax.device_get(grad_filters), dtype=np.float32)   # fixed at "init"
    KF, KH, KW = gf.shape
    assert C == 3 and KF == 2, "RGBgradients expects RGB input and 2 filters"
    assert KH % 2 == 1 and KW % 2 == 1, "'same' conv assumes odd kernel dims"
    ph, pw = (KH - 1) // 2, (KW - 1) // 2
    OC = 2 * C
    use_roll = (W % 128 == 0)
    in_bytes = jnp.dtype(x.dtype).itemsize

    budget = _vmem_budget_bytes()
    if tile_h is None:
        tH = _pick_tile_h(H, W, C, OC, ph, pw, in_bytes, budget,
                          prefer_even_split=(N == 1))
    else:
        tH = int(tile_h)
    assert H % tH == 0 and (tH % 8 == 0 or tH == H)
    nH = H // tH
    hb = 8                                         # H-block size of the halo fetches
    assert nH == 1 or ph <= hb, "halo rows must fit in one 8-row block"
    hpb = tH // hb if nH > 1 else 1                # 8-row blocks per tile
    nb = H // hb if nH > 1 else 1                  # 8-row blocks along H

    wx = tuple(tuple(float(v) for v in row) for row in gf[0])
    wy = tuple(tuple(float(v) for v in row) for row in gf[1])

    kernel = _make_kernel(C, OC, KH, KW, tH, W, ph, pw, hb, nH, wx, wy, use_roll)

    main_spec = pl.BlockSpec((1, C, tH, W), lambda n, h: (n, 0, h, 0))
    out_spec = pl.BlockSpec((1, OC, tH, W), lambda n, h: (n, 0, h, 0))
    in_specs = [main_spec]
    operands = [x]
    if nH > 1:
        # Halo specs fetch one 8-row block of the neighbouring tile (clamped at the
        # image borders; the kernel ignores them there via pl.when).
        top_spec = pl.BlockSpec(
            (1, C, hb, W), lambda n, h: (n, 0, jnp.maximum(h * hpb - 1, 0), 0))
        bot_spec = pl.BlockSpec(
            (1, C, hb, W), lambda n, h: (n, 0, jnp.minimum((h + 1) * hpb, nb - 1), 0))
        in_specs += [top_spec, bot_spec]
        operands += [x, x]

    nnz_x = sum(1 for di in range(KH) for dj in range(KW) if wx[di][dj] != 0.0)
    nnz_y = sum(1 for di in range(KH) for dj in range(KW) if wy[di][dj] != 0.0)
    cost = pl.CostEstimate(
        flops=2 * N * H * W * C * max(nnz_x + nnz_y, 1),
        transcendentals=0,
        bytes_accessed=N * H * W * (C * in_bytes + OC * 4),
    )

    slab_w = W if use_roll else W + 2 * pw
    return pl.pallas_call(
        kernel,
        out_shape=jax.ShapeDtypeStruct((N, OC, H, W), jnp.float32),
        grid_spec=pltpu.PrefetchScalarGridSpec(
            num_scalar_prefetch=0,
            grid=(N, nH),
            in_specs=in_specs,
            out_specs=out_spec,
            scratch_shapes=[pltpu.VMEM((C, tH + 2 * ph, slab_w), jnp.float32)],
        ),
        compiler_params=pltpu.CompilerParams(
            dimension_semantics=("parallel", "parallel"),
            vmem_limit_bytes=int(budget)),
        cost_estimate=cost,
    )(*operands)


if __name__ == "__main__":
    # Deterministic gradient filters (Sobel x / y), matching the module's
    # (2, kh, kw) `weight` constructor argument.
    sobel_x = np.array([[1.0, 0.0, -1.0],
                        [2.0, 0.0, -2.0],
                        [1.0, 0.0, -1.0]], dtype=np.float32)
    sobel_y = sobel_x.T.copy()
    grad_w = np.stack([sobel_x, sobel_y])                  # (2, 3, 3)
    w_final = jnp.asarray(build_conv_weight(grad_w))       # (6, 3, 3, 3), as the module builds

    def ref_conv(x):
        return lax.conv_general_dilated(
            x.astype(jnp.float32), w_final, window_strides=(1, 1),
            padding=((1, 1), (1, 1)), dimension_numbers=("NCHW", "OIHW", "NCHW"))

    key = jax.random.PRNGKey(0)
    k1, k2 = jax.random.split(key)

    # Small deterministic input: batch=2, RGB, 16x16 — single-tile (no-halo) path.
    x = jax.random.normal(k1, (2, 3, 16, 16), dtype=jnp.float32)
    out = jax.block_until_ready(rgb_gradients(x, grad_w))
    assert out.shape == (2, 6, 16, 16), out.shape
    np.testing.assert_allclose(np.asarray(out), np.asarray(ref_conv(x)),
                               atol=1e-4, rtol=1e-4)

    # Also exercise the H-tiled path (halo rows across tile boundaries).
    x2 = jax.random.normal(k2, (1, 3, 32, 16), dtype=jnp.float32)
    out2 = jax.block_until_ready(rgb_gradients(x2, grad_w, tile_h=16))
    np.testing.assert_allclose(np.asarray(out2), np.asarray(ref_conv(x2)),
                               atol=1e-4, rtol=1e-4)

    print("KERNEL_OK")
</pallas_src>

<mosaic_0001>
module attributes {stable_mosaic.version = 11 : i64} {
  func.func @kernel(%arg0: i32, %arg1: i32, %arg2: memref<1x3x16x16xf32, #tpu.memory_space<vmem>>, %arg3: memref<1x6x16x16xf32, #tpu.memory_space<vmem>>, %arg4: memref<3x18x18xf32, #tpu.memory_space<vmem>>) attributes {dimension_semantics = [#tpu.dimension_semantics<parallel>, #tpu.dimension_semantics<parallel>], iteration_bounds = array<i64: 2, 1>, scalar_prefetch = 0 : i64, scratch_operands = 1 : i64, tpu.core_type = #tpu.core_type<tc>, window_params = [{transform_indices = @transform_0, window_bounds = array<i64: 1, 3, 16, 16>}, {transform_indices = @transform_1, window_bounds = array<i64: 1, 6, 16, 16>}]} {
    %c0 = arith.constant 0 : index
    %c0_0 = arith.constant 0 : index
    %c0_1 = arith.constant 0 : index
    %c0_2 = arith.constant 0 : index
    %0 = vector.load %arg2[%c0, %c0_0, %c0_1, %c0_2] : memref<1x3x16x16xf32, #tpu.memory_space<vmem>>, vector<1x3x16x16xf32>
    %1 = vector.shape_cast %0 : vector<1x3x16x16xf32> to vector<3x16x16xf32>
    %cst = arith.constant 0.000000e+00 : f32
    %2 = vector.broadcast %cst : f32 to vector<3x18x1xf32>
    %c0_3 = arith.constant 0 : index
    %c0_4 = arith.constant 0 : index
    %c0_5 = arith.constant 0 : index
    %3 = vector.load %arg4[%c0_3, %c0_4, %c0_5] : memref<3x18x18xf32, #tpu.memory_space<vmem>>, vector<3x18x1xf32>
    tpu.vector_store %arg4[%c0_3, %c0_4, %c0_5], %2 {strides = array<i32>} : memref<3x18x18xf32, #tpu.memory_space<vmem>>, vector<3x18x1xf32>,
    %c0_6 = arith.constant 0 : index
    %c0_7 = arith.constant 0 : index
    %c17 = arith.constant 17 : index
    %4 = vector.load %arg4[%c0_6, %c0_7, %c17] : memref<3x18x18xf32, #tpu.memory_space<vmem>>, vector<3x18x1xf32>
    tpu.vector_store %arg4[%c0_6, %c0_7, %c17], %2 {strides = array<i32>} : memref<3x18x18xf32, #tpu.memory_space<vmem>>, vector<3x18x1xf32>,
    %c0_8 = arith.constant 0 : index
    %c1 = arith.constant 1 : index
    %c1_9 = arith.constant 1 : index
    %5 = vector.load %arg4[%c0_8, %c1, %c1_9] : memref<3x18x18xf32, #tpu.memory_space<vmem>>, vector<3x16x16xf32>
    tpu.vector_store %arg4[%c0_8, %c1, %c1_9], %1 {strides = array<i32>} : memref<3x18x18xf32, #tpu.memory_space<vmem>>, vector<3x16x16xf32>,
    %cst_10 = arith.constant 0.000000e+00 : f32
    %6 = vector.broadcast %cst_10 : f32 to vector<3x1x16xf32>
    %c0_11 = arith.constant 0 : index
    %c0_12 = arith.constant 0 : index
    %c1_13 = arith.constant 1 : index
    %7 = vector.load %arg4[%c0_11, %c0_12, %c1_13] : memref<3x18x18xf32, #tpu.memory_space<vmem>>, vector<3x1x16xf32>
    tpu.vector_store %arg4[%c0_11, %c0_12, %c1_13], %6 {strides = array<i32>} : memref<3x18x18xf32, #tpu.memory_space<vmem>>, vector<3x1x16xf32>,
    %c0_14 = arith.constant 0 : index
    %c17_15 = arith.constant 17 : index
    %c1_16 = arith.constant 1 : index
    %8 = vector.load %arg4[%c0_14, %c17_15, %c1_16] : memref<3x18x18xf32, #tpu.memory_space<vmem>>, vector<3x1x16xf32>
    tpu.vector_store %arg4[%c0_14, %c17_15, %c1_16], %6 {strides = array<i32>} : memref<3x18x18xf32, #tpu.memory_space<vmem>>, vector<3x1x16xf32>,
    %c0_17 = arith.constant 0 : index
    %c0_18 = arith.constant 0 : index
    %c0_19 = arith.constant 0 : index
    %9 = vector.load %arg4[%c0_17, %c0_18, %c0_19] : memref<3x18x18xf32, #tpu.memory_space<vmem>>, vector<1x16x18xf32>
    %10 = vector.shape_cast %9 : vector<1x16x18xf32> to vector<16x18xf32>
    %11 = vector.extract_strided_slice %10 {offsets = [0, 0], sizes = [16, 16], strides = [1, 1]} : vector<16x18xf32> to vector<16x16xf32>
    %12 = vector.extract_strided_slice %10 {offsets = [0, 1], sizes = [16, 16], strides = [1, 1]} : vector<16x18xf32> to vector<16x16xf32>
    %cst_20 = arith.constant 2.000000e+00 : f32
    %13 = vector.broadcast %cst_20 : f32 to vector<16x16xf32>
    %14 = arith.mulf %13, %12 : vector<16x16xf32>
    %15 = arith.addf %11, %14 : vector<16x16xf32>
    %16 = vector.extract_strided_slice %10 {offsets = [0, 2], sizes = [16, 16], strides = [1, 1]} : vector<16x18xf32> to vector<16x16xf32>
    %cst_21 = arith.constant 0.000000e+00 : f32
    %17 = vector.broadcast %cst_21 : f32 to vector<16x16xf32>
    %18 = arith.subf %17, %16 : vector<16x16xf32>
    %19 = arith.addf %11, %18 : vector<16x16xf32>
    %20 = arith.addf %15, %16 : vector<16x16xf32>
    %c0_22 = arith.constant 0 : index
    %c1_23 = arith.constant 1 : index
    %c0_24 = arith.constant 0 : index
    %21 = vector.load %arg4[%c0_22, %c1_23, %c0_24] : memref<3x18x18xf32, #tpu.memory_space<vmem>>, vector<1x16x18xf32>
    %22 = vector.shape_cast %21 : vector<1x16x18xf32> to vector<16x18xf32>
    %23 = vector.extract_strided_slice %22 {offsets = [0, 0], sizes = [16, 16], strides = [1, 1]} : vector<16x18xf32> to vector<16x16xf32>
    %cst_25 = arith.constant 2.000000e+00 : f32
    %24 = vector.broadcast %cst_25 : f32 to vector<16x16xf32>
    %25 = arith.mulf %24, %23 : vector<16x16xf32>
    %26 = arith.addf %19, %25 : vector<16x16xf32>
    %27 = vector.extract_strided_slice %22 {offsets = [0, 2], sizes = [16, 16], strides = [1, 1]} : vector<16x18xf32> to vector<16x16xf32>
    %cst_26 = arith.constant -2.000000e+00 : f32
    %28 = vector.broadcast %cst_26 : f32 to vector<16x16xf32>
    %29 = arith.mulf %28, %27 : vector<16x16xf32>
    %30 = arith.addf %26, %29 : vector<16x16xf32>
    %c0_27 = arith.constant 0 : index
    %c2 = arith.constant 2 : index
    %c0_28 = arith.constant 0 : index
    %31 = vector.load %arg4[%c0_27, %c2, %c0_28] : memref<3x18x18xf32, #tpu.memory_space<vmem>>, vector<1x16x18xf32>
    %32 = vector.shape_cast %31 : vector<1x16x18xf32> to vector<16x18xf32>
    %33 = vector.extract_strided_slice %32 {offsets = [0, 0], sizes = [16, 16], strides = [1, 1]} : vector<16x18xf32> to vector<16x16xf32>
    %34 = arith.addf %30, %33 : vector<16x16xf32>
    %cst_29 = arith.constant 0.000000e+00 : f32
    %35 = vector.broadcast %cst_29 : f32 to vector<16x16xf32>
    %36 = arith.subf %35, %33 : vector<16x16xf32>
    %37 = arith.addf %20, %36 : vector<16x16xf32>
    %38 = vector.extract_strided_slice %32 {offsets = [0, 1], sizes = [16, 16], strides = [1, 1]} : vector<16x18xf32> to vector<16x16xf32>
    %cst_30 = arith.constant -2.000000e+00 : f32
    %39 = vector.broadcast %cst_30 : f32 to vector<16x16xf32>
    %40 = arith.mulf %39, %38 : vector<16x16xf32>
    %41 = arith.addf %37, %40 : vector<16x16xf32>
    %42 = vector.extract_strided_slice %32 {offsets = [0, 2], sizes = [16, 16], strides = [1, 1]} : vector<16x18xf32> to vector<16x16xf32>
    %cst_31 = arith.constant 0.000000e+00 : f32
    %43 = vector.broadcast %cst_31 : f32 to vector<16x16xf32>
    %44 = arith.subf %43, %42 : vector<16x16xf32>
    %45 = arith.addf %34, %44 : vector<16x16xf32>
    %cst_32 = arith.constant 0.000000e+00 : f32
    %46 = vector.broadcast %cst_32 : f32 to vector<16x16xf32>
    %47 = arith.subf %46, %42 : vector<16x16xf32>
    %48 = arith.addf %41, %47 : vector<16x16xf32>
    %c0_33 = arith.constant 0 : index
    %c0_34 = arith.constant 0 : index
    %c0_35 = arith.constant 0 : index
    %c0_36 = arith.constant 0 : index
    %49 = vector.load %arg3[%c0_33, %c0_34, %c0_35, %c0_36] : memref<1x6x16x16xf32, #tpu.memory_space<vmem>>, vector<1x1x16x16xf32>
    %50 = vector.shape_cast %49 : vector<1x1x16x16xf32> to vector<16x16xf32>
    %51 = vector.shape_cast %45 : vector<16x16xf32> to vector<1x1x16x16xf32>
    tpu.vector_store %arg3[%c0_33, %c0_34, %c0_35, %c0_36], %51 {strides = array<i32>} : memref<1x6x16x16xf32, #tpu.memory_space<vmem>>, vector<1x1x16x16xf32>,
    %c0_37 = arith.constant 0 : index
    %c1_38 = arith.constant 1 : index
    %c0_39 = arith.constant 0 : index
    %c0_40 = arith.constant 0 : index
    %52 = vector.load %arg3[%c0_37, %c1_38, %c0_39, %c0_40] : memref<1x6x16x16xf32, #tpu.memory_space<vmem>>, vector<1x1x16x16xf32>
    %53 = vector.shape_cast %52 : vector<1x1x16x16xf32> to vector<16x16xf32>
    %54 = vector.shape_cast %48 : vector<16x16xf32> to vector<1x1x16x16xf32>
    tpu.vector_store %arg3[%c0_37, %c1_38, %c0_39, %c0_40], %54 {strides = array<i32>} : memref<1x6x16x16xf32, #tpu.memory_space<vmem>>, vector<1x1x16x16xf32>,
    %c1_41 = arith.constant 1 : index
    %c0_42 = arith.constant 0 : index
    %c0_43 = arith.constant 0 : index
    %55 = vector.load %arg4[%c1_41, %c0_42, %c0_43] : memref<3x18x18xf32, #tpu.memory_space<vmem>>, vector<1x16x18xf32>
    %56 = vector.shape_cast %55 : vector<1x16x18xf32> to vector<16x18xf32>
    %57 = vector.extract_strided_slice %56 {offsets = [0, 0], sizes = [16, 16], strides = [1, 1]} : vector<16x18xf32> to vector<16x16xf32>
    %58 = vector.extract_strided_slice %56 {offsets = [0, 1], sizes = [16, 16], strides = [1, 1]} : vector<16x18xf32> to vector<16x16xf32>
    %cst_44 = arith.constant 2.000000e+00 : f32
    %59 = vector.broadcast %cst_44 : f32 to vector<16x16xf32>
    %60 = arith.mulf %59, %58 : vector<16x16xf32>
    %61 = arith.addf %57, %60 : vector<16x16xf32>
    %62 = vector.extract_strided_slice %56 {offsets = [0, 2], sizes = [16, 16], strides = [1, 1]} : vector<16x18xf32> to vector<16x16xf32>
    %cst_45 = arith.constant 0.000000e+00 : f32
    %63 = vector.broadcast %cst_45 : f32 to vector<16x16xf32>
    %64 = arith.subf %63, %62 : vector<16x16xf32>
    %65 = arith.addf %57, %64 : vector<16x16xf32>
    %66 = arith.addf %61, %62 : vector<16x16xf32>
    %c1_46 = arith.constant 1 : index
    %c1_47 = arith.constant 1 : index
    %c0_48 = arith.constant 0 : index
    %67 = vector.load %arg4[%c1_46, %c1_47, %c0_48] : memref<3x18x18xf32, #tpu.memory_space<vmem>>, vector<1x16x18xf32>
    %68 = vector.shape_cast %67 : vector<1x16x18xf32> to vector<16x18xf32>
    %69 = vector.extract_strided_slice %68 {offsets = [0, 0], sizes = [16, 16], strides = [1, 1]} : vector<16x18xf32> to vector<16x16xf32>
    %cst_49 = arith.constant 2.000000e+00 : f32
    %70 = vector.broadcast %cst_49 : f32 to vector<16x16xf32>
    %71 = arith.mulf %70, %69 : vector<16x16xf32>
    %72 = arith.addf %65, %71 : vector<16x16xf32>
    %73 = vector.extract_strided_slice %68 {offsets = [0, 2], sizes = [16, 16], strides = [1, 1]} : vector<16x18xf32> to vector<16x16xf32>
    %cst_50 = arith.constant -2.000000e+00 : f32
    %74 = vector.broadcast %cst_50 : f32 to vector<16x16xf32>
    %75 = arith.mulf %74, %73 : vector<16x16xf32>
    %76 = arith.addf %72, %75 : vector<16x16xf32>
    %c1_51 = arith.constant 1 : index
    %c2_52 = arith.constant 2 : index
    %c0_53 = arith.constant 0 : index
    %77 = vector.load %arg4[%c1_51, %c2_52, %c0_53] : memref<3x18x18xf32, #tpu.memory_space<vmem>>, vector<1x16x18xf32>
    %78 = vector.shape_cast %77 : vector<1x16x18xf32> to vector<16x18xf32>
    %79 = vector.extract_strided_slice %78 {offsets = [0, 0], sizes = [16, 16], strides = [1, 1]} : vector<16x18xf32> to vector<16x16xf32>
    %80 = arith.addf %76, %79 : vector<16x16xf32>
    %cst_54 = arith.constant 0.000000e+00 : f32
    %81 = vector.broadcast %cst_54 : f32 to vector<16x16xf32>
    %82 = arith.subf %81, %79 : vector<16x16xf32>
    %83 = arith.addf %66, %82 : vector<16x16xf32>
    %84 = vector.extract_strided_slice %78 {offsets = [0, 1], sizes = [16, 16], strides = [1, 1]} : vector<16x18xf32> to vector<16x16xf32>
    %cst_55 = arith.constant -2.000000e+00 : f32
    %85 = vector.broadcast %cst_55 : f32 to vector<16x16xf32>
    %86 = arith.mulf %85, %84 : vector<16x16xf32>
    %87 = arith.addf %83, %86 : vector<16x16xf32>
    %88 = vector.extract_strided_slice %78 {offsets = [0, 2], sizes = [16, 16], strides = [1, 1]} : vector<16x18xf32> to vector<16x16xf32>
    %cst_56 = arith.constant 0.000000e+00 : f32
    %89 = vector.broadcast %cst_56 : f32 to vector<16x16xf32>
    %90 = arith.subf %89, %88 : vector<16x16xf32>
    %91 = arith.addf %80, %90 : vector<16x16xf32>
    %cst_57 = arith.constant 0.000000e+00 : f32
    %92 = vector.broadcast %cst_57 : f32 to vector<16x16xf32>
    %93 = arith.subf %92, %88 : vector<16x16xf32>
    %94 = arith.addf %87, %93 : vector<16x16xf32>
    %c0_58 = arith.constant 0 : index
    %c2_59 = arith.constant 2 : index
    %c0_60 = arith.constant 0 : index
    %c0_61 = arith.constant 0 : index
    %95 = vector.load %arg3[%c0_58, %c2_59, %c0_60, %c0_61] : memref<1x6x16x16xf32, #tpu.memory_space<vmem>>, vector<1x1x16x16xf32>
    %96 = vector.shape_cast %95 : vector<1x1x16x16xf32> to vector<16x16xf32>
    %97 = vector.shape_cast %91 : vector<16x16xf32> to vector<1x1x16x16xf32>
    tpu.vector_store %arg3[%c0_58, %c2_59, %c0_60, %c0_61], %97 {strides = array<i32>} : memref<1x6x16x16xf32, #tpu.memory_space<vmem>>, vector<1x1x16x16xf32>,
    %c0_62 = arith.constant 0 : index
    %c3 = arith.constant 3 : index
    %c0_63 = arith.constant 0 : index
    %c0_64 = arith.constant 0 : index
    %98 = vector.load %arg3[%c0_62, %c3, %c0_63, %c0_64] : memref<1x6x16x16xf32, #tpu.memory_space<vmem>>, vector<1x1x16x16xf32>
    %99 = vector.shape_cast %98 : vector<1x1x16x16xf32> to vector<16x16xf32>
    %100 = vector.shape_cast %94 : vector<16x16xf32> to vector<1x1x16x16xf32>
    tpu.vector_store %arg3[%c0_62, %c3, %c0_63, %c0_64], %100 {strides = array<i32>} : memref<1x6x16x16xf32, #tpu.memory_space<vmem>>, vector<1x1x16x16xf32>,
    %c2_65 = arith.constant 2 : index
    %c0_66 = arith.constant 0 : index
    %c0_67 = arith.constant 0 : index
    %101 = vector.load %arg4[%c2_65, %c0_66, %c0_67] : memref<3x18x18xf32, #tpu.memory_space<vmem>>, vector<1x16x18xf32>
    %102 = vector.shape_cast %101 : vector<1x16x18xf32> to vector<16x18xf32>
    %103 = vector.extract_strided_slice %102 {offsets = [0, 0], sizes = [16, 16], strides = [1, 1]} : vector<16x18xf32> to vector<16x16xf32>
    %104 = vector.extract_strided_slice %102 {offsets = [0, 1], sizes = [16, 16], strides = [1, 1]} : vector<16x18xf32> to vector<16x16xf32>
    %cst_68 = arith.constant 2.000000e+00 : f32
    %105 = vector.broadcast %cst_68 : f32 to vector<16x16xf32>
    %106 = arith.mulf %105, %104 : vector<16x16xf32>
    %107 = arith.addf %103, %106 : vector<16x16xf32>
    %108 = vector.extract_strided_slice %102 {offsets = [0, 2], sizes = [16, 16], strides = [1, 1]} : vector<16x18xf32> to vector<16x16xf32>
    %cst_69 = arith.constant 0.000000e+00 : f32
    %109 = vector.broadcast %cst_69 : f32 to vector<16x16xf32>
    %110 = arith.subf %109, %108 : vector<16x16xf32>
    %111 = arith.addf %103, %110 : vector<16x16xf32>
    %112 = arith.addf %107, %108 : vector<16x16xf32>
    %c2_70 = arith.constant 2 : index
    %c1_71 = arith.constant 1 : index
    %c0_72 = arith.constant 0 : index
    %113 = vector.load %arg4[%c2_70, %c1_71, %c0_72] : memref<3x18x18xf32, #tpu.memory_space<vmem>>, vector<1x16x18xf32>
    %114 = vector.shape_cast %113 : vector<1x16x18xf32> to vector<16x18xf32>
    %115 = vector.extract_strided_slice %114 {offsets = [0, 0], sizes = [16, 16], strides = [1, 1]} : vector<16x18xf32> to vector<16x16xf32>
    %cst_73 = arith.constant 2.000000e+00 : f32
    %116 = vector.broadcast %cst_73 : f32 to vector<16x16xf32>
    %117 = arith.mulf %116, %115 : vector<16x16xf32>
    %118 = arith.addf %111, %117 : vector<16x16xf32>
    %119 = vector.extract_strided_slice %114 {offsets = [0, 2], sizes = [16, 16], strides = [1, 1]} : vector<16x18xf32> to vector<16x16xf32>
    %cst_74 = arith.constant -2.000000e+00 : f32
    %120 = vector.broadcast %cst_74 : f32 to vector<16x16xf32>
    %121 = arith.mulf %120, %119 : vector<16x16xf32>
    %122 = arith.addf %118, %121 : vector<16x16xf32>
    %c2_75 = arith.constant 2 : index
    %c2_76 = arith.constant 2 : index
    %c0_77 = arith.constant 0 : index
    %123 = vector.load %arg4[%c2_75, %c2_76, %c0_77] : memref<3x18x18xf32, #tpu.memory_space<vmem>>, vector<1x16x18xf32>
    %124 = vector.shape_cast %123 : vector<1x16x18xf32> to vector<16x18xf32>
    %125 = vector.extract_strided_slice %124 {offsets = [0, 0], sizes = [16, 16], strides = [1, 1]} : vector<16x18xf32> to vector<16x16xf32>
    %126 = arith.addf %122, %125 : vector<16x16xf32>
    %cst_78 = arith.constant 0.000000e+00 : f32
    %127 = vector.broadcast %cst_78 : f32 to vector<16x16xf32>
    %128 = arith.subf %127, %125 : vector<16x16xf32>
    %129 = arith.addf %112, %128 : vector<16x16xf32>
    %130 = vector.extract_strided_slice %124 {offsets = [0, 1], sizes = [16, 16], strides = [1, 1]} : vector<16x18xf32> to vector<16x16xf32>
    %cst_79 = arith.constant -2.000000e+00 : f32
    %131 = vector.broadcast %cst_79 : f32 to vector<16x16xf32>
    %132 = arith.mulf %131, %130 : vector<16x16xf32>
    %133 = arith.addf %129, %132 : vector<16x16xf32>
    %134 = vector.extract_strided_slice %124 {offsets = [0, 2], sizes = [16, 16], strides = [1, 1]} : vector<16x18xf32> to vector<16x16xf32>
    %cst_80 = arith.constant 0.000000e+00 : f32
    %135 = vector.broadcast %cst_80 : f32 to vector<16x16xf32>
    %136 = arith.subf %135, %134 : vector<16x16xf32>
    %137 = arith.addf %126, %136 : vector<16x16xf32>
    %cst_81 = arith.constant 0.000000e+00 : f32
    %138 = vector.broadcast %cst_81 : f32 to vector<16x16xf32>
    %139 = arith.subf %138, %134 : vector<16x16xf32>
    %140 = arith.addf %133, %139 : vector<16x16xf32>
    %c0_82 = arith.constant 0 : index
    %c4 = arith.constant 4 : index
    %c0_83 = arith.constant 0 : index
    %c0_84 = arith.constant 0 : index
    %141 = vector.load %arg3[%c0_82, %c4, %c0_83, %c0_84] : memref<1x6x16x16xf32, #tpu.memory_space<vmem>>, vector<1x1x16x16xf32>
    %142 = vector.shape_cast %141 : vector<1x1x16x16xf32> to vector<16x16xf32>
    %143 = vector.shape_cast %137 : vector<16x16xf32> to vector<1x1x16x16xf32>
    tpu.vector_store %arg3[%c0_82, %c4, %c0_83, %c0_84], %143 {strides = array<i32>} : memref<1x6x16x16xf32, #tpu.memory_space<vmem>>, vector<1x1x16x16xf32>,
    %c0_85 = arith.constant 0 : index
    %c5 = arith.constant 5 : index
    %c0_86 = arith.constant 0 : index
    %c0_87 = arith.constant 0 : index
    %144 = vector.load %arg3[%c0_85, %c5, %c0_86, %c0_87] : memref<1x6x16x16xf32, #tpu.memory_space<vmem>>, vector<1x1x16x16xf32>
    %145 = vector.shape_cast %144 : vector<1x1x16x16xf32> to vector<16x16xf32>
    %146 = vector.shape_cast %140 : vector<16x16xf32> to vector<1x1x16x16xf32>
    tpu.vector_store %arg3[%c0_85, %c5, %c0_86, %c0_87], %146 {strides = array<i32>} : memref<1x6x16x16xf32, #tpu.memory_space<vmem>>, vector<1x1x16x16xf32>,
    return
  }
  func.func @transform_0(%arg0: i32, %arg1: i32) -> (i32, i32, i32, i32) {
    %c0_i32 = arith.constant 0 : i32
    %c0_i32_0 = arith.constant 0 : i32
    %c0_i32_1 = arith.constant 0 : i32
    return %arg0, %c0_i32, %arg1, %c0_i32_0 : i32, i32, i32, i32
  }
  func.func @transform_1(%arg0: i32, %arg1: i32) -> (i32, i32, i32, i32) {
    %c0_i32 = arith.constant 0 : i32
    %c0_i32_0 = arith.constant 0 : i32
    %c0_i32_1 = arith.constant 0 : i32
    return %arg0, %c0_i32, %arg1, %c0_i32_0 : i32, i32, i32, i32
  }
}

</mosaic_0001>

<llo_original>
// kernel: tpu_custom_call.1
$region0: #{tpu_custom_call.1}
  #allocation0 [shape = 'u32[]', space=smem, size = 0x4, offset = 0x4, fixed_abs, tag = 'smem constant byte address 0x4 - core index']
  #allocation1 [shape = 'u32[144,128]{1,0:T(1,128)}', space=vmem, size = 0x12000, scoped, tag = 'internal scratch']
  #allocation2 [shape = 'f32[3,18,18]{2,1,0:T(8,128)}', space=vmem, size = 0x9000, scoped, tag = 'scratch operand']
  %s0 = inlined_call_operand.hbm [shape: f32[2,3,16,16], index: 0, kind: input, shape index: {}]
  %s1 = inlined_call_operand.hbm [shape: f32[2,6,16,16], index: 1, kind: output, shape index: {}]
  %s2 = sld [smem:[#allocation0]]
  $region41: #{tpu_custom_call.1} parent=0
    _
  %s4 = ssub.s32 1, %s2
  %s5 = scalar_select 0, %s4, %s2
  $region1: #{tpu_custom_call.1} parent=0
    #allocation3 [shape = 'u8[49152]{0}', space=vmem, size = 0xc000, scoped, tag = 'input window, operand 0']
    #allocation4 [shape = 's32[2]{0}', space=sflag, size = 0x8, scoped, tag = 'scoped memory for tpu_custom_call.1']
    #allocation5 [shape = 's32[2]{0}', space=sflag, size = 0x8, scoped, tag = 'scoped memory for tpu_custom_call.1']
    #allocation6 [shape = 'u8[98304]{0}', space=vmem, size = 0x18000, scoped, tag = 'output window, operand 0']
    %6 = vsyncpa [#allocation4], 0
    %s7 = scalar_lea.sflag [#allocation4], 1
    %8 = vsyncpa %s7, 0
    %9 = vsyncpa [#allocation5], 0
    %s10 = scalar_lea.sflag [#allocation5], 1
    %11 = vsyncpa %s10, 0
    loop: start=0, step=1, limit=4
    $region2: #{tpu_custom_call.1} parent=1 // loop_pre_header
      _
    $region3: #{tpu_custom_call.1} parent=1 // loop_header
      %s13 = sphi 0, %s17
      %p14 = scmp.ge.s32.totalorder %s13, 4
      %s20 = sphi 0, %s32
      %s21 = sphi 0, %s28
      %s22 = sphi 0, %s20
      %s23 = sphi 0, %s21
      %s24 = sphi 0, %s22
      %s25 = sphi 0, %s23
      %s37 = sphi 0, %s39
      %s40 = sphi 0, %s37
      %s41 = sphi 0, %s40
      %s57 = sphi 0, %s41
      %s65 = sphi 0, %s67
      %s68 = sphi 0, %s65
      %s69 = sphi 0, %s68
      %s85 = sphi 0, %s69
    $region4: #{tpu_custom_call.1} parent=1 // loop_header_branch
      %16 = sbr.rel (%p14) target = $region8
    $region5: #{tpu_custom_call.1} parent=1 // loop_body
      %s18 = ssub.s32 %s13, 1
      %s19 = ssub.s32 %s13, 2
      %s26 = sadd.s32 1, %s21
      %p27 = scmp.ge.s32.totalorder %s26, 1
      %s28 = scalar_select %p27, 0, %s26
      %s29 = sadd.s32 1, %s20
      %s30 = scalar_select %p27, %s29, %s20
      %p31 = scmp.ge.s32.totalorder %s30, 2
      %s32 = scalar_select %p31, 0, %s30
      %s33 = ssub.s32 %s20, %s32
      %s34 = ssub.s32 %s21, %s28
      %s35 = sor.u32 %s33, %s34
      %p36 = scmp.eq.s32.totalorder %s35, 0
      %s38 = sadd.s32 %s37, 1
      %s39 = scalar_select %p36, %s37, %s38
      %p42 = pneg %p36
      %p43 = scmp.eq.s32.totalorder %s13, 1
      %p44 = por %p42, %p43
      %p45 = scmp.ne.s32.totalorder %s37, %s40
      %p46 = scmp.eq.s32.totalorder %s13, 0
      %p47 = por %p45, %p46
      %p48 = scmp.ne.s32.totalorder %s37, %s40
      %p49 = scmp.eq.s32.totalorder %s18, 1
      %p50 = por %p48, %p49
      %p51 = scmp.ne.s32.totalorder %s40, %s41
      %p52 = scmp.eq.s32.totalorder %s18, 0
      %p53 = por %p51, %p52
      %p54 = scmp.ne.s32.totalorder %s40, %s41
      %p55 = scmp.eq.s32.totalorder %s19, 1
      %p56 = por %p54, %p55
      %p58 = scmp.ne.s32.totalorder %s41, %s57
      %p59 = scmp.eq.s32.totalorder %s19, 0
      %p60 = por %p58, %p59
      %s61 = ssub.s32 %s20, %s32
      %s62 = ssub.s32 %s21, %s28
      %s63 = sor.u32 %s61, %s62
      %p64 = scmp.eq.s32.totalorder %s63, 0
      %s66 = sadd.s32 %s65, 1
      %s67 = scalar_select %p64, %s65, %s66
      %p70 = pneg %p64
      %p71 = scmp.eq.s32.totalorder %s13, 1
      %p72 = por %p70, %p71
      %p73 = scmp.ne.s32.totalorder %s65, %s68
      %p74 = scmp.eq.s32.totalorder %s13, 0
      %p75 = por %p73, %p74
      %p76 = scmp.ne.s32.totalorder %s65, %s68
      %p77 = scmp.eq.s32.totalorder %s18, 1
      %p78 = por %p76, %p77
      %p79 = scmp.ne.s32.totalorder %s68, %s69
      %p80 = scmp.eq.s32.totalorder %s18, 0
      %p81 = por %p79, %p80
      %p82 = scmp.ne.s32.totalorder %s68, %s69
      %p83 = scmp.eq.s32.totalorder %s19, 1
      %p84 = por %p82, %p83
      %p86 = scmp.ne.s32.totalorder %s69, %s85
      %p87 = scmp.eq.s32.totalorder %s19, 0
      %p88 = por %p86, %p87
      %p89 = scmp.le.s32.totalorder 1, %s13
      %p90 = scmp.lt.s32.totalorder %s13, 3
      %p91 = pnand %p89, %p90
      %p92 = pneg %p91
      // Predicated region
      $region9: #{tpu_custom_call.1} parent=5 // pred_check
        _
      $region10: #{tpu_custom_call.1} parent=5 // pred_check_branch
        %94 = sbr.rel (%p91) target = $region12
      $region11: #{tpu_custom_call.1} parent=5 // pred_region
        %s95 = ssub.s32 %s13, 1
      $region12: #{tpu_custom_call.1} parent=5 // pred_fallthru
        _
      %p96 = scmp.lt.s32.totalorder %s13, 2
      // Predicated region
      $region13: #{tpu_custom_call.1} parent=5 // pred_check
        %p97 = pneg %p96
      $region14: #{tpu_custom_call.1} parent=5 // pred_check_branch
        %99 = sbr.rel (%p97) target = $region16
      $region15: #{tpu_custom_call.1} parent=5 // pred_region
        // Predicated region
        $region17: #{tpu_custom_call.1} parent=15 // pred_check
          %p100 = pneg %p47
        $region18: #{tpu_custom_call.1} parent=15 // pred_check_branch
          %102 = sbr.rel (%p100) target = $region20
        $region19: #{tpu_custom_call.1} parent=15 // pred_region
          %s103 = sand.u32 %s37, 1
          %s104 = scalar_lea.sflag [#allocation4], %s103
          %s105 = sand.u32 %s37, 1
          %s106 = smul.addr %s105, 48
          %s107 = scalar_lea.vmem [#allocation3], %s106
          %s108 = smul.u32 2, %s21
          %s110 = ssub.s32 768, 768
          %111 = vsyncadd %s104, %s110
          %s112 = smul.addr %s20, 6
          %s113 = sadd.s32 %s108, %s112
          %s114 = smul.addr %s113, 128
          %s115 = scalar_lea.hbm %s0, %s114
          %s116 = sshll.u32 %s107, 4
          %s117 = int_to_ptr.vmem [resolvable:$true] %s116
          %122 = dma.hbm_to_vmem [thread:$0]  %s115, 768, %s117, %s104, 128, 128, 8
        $region20: #{tpu_custom_call.1} parent=15 // pred_fallthru
          _
      $region16: #{tpu_custom_call.1} parent=5 // pred_fallthru
        _
      %p123 = scmp.le.s32.totalorder 1, %s13
      %p124 = scmp.lt.s32.totalorder %s13, 3
      %p125 = pnand %p123, %p124
      %p126 = pneg %p125
      // Predicated region
      $region21: #{tpu_custom_call.1} parent=5 // pred_check
        _
      $region22: #{tpu_custom_call.1} parent=5 // pred_check_branch
        %128 = sbr.rel (%p125) target = $region24
      $region23: #{tpu_custom_call.1} parent=5 // pred_region
        %s129 = ssub.s32 %s13, 1
        %s130 = sand.u32 %s40, 1
        %s131 = scalar_lea.sflag [#allocation4], %s130
        %s132 = sand.u32 %s40, 1
        %s133 = smul.addr %s132, 48
        %s134 = scalar_lea.vmem [#allocation3], %s133
        // Predicated region
        $region25: #{tpu_custom_call.1} parent=23 // pred_check
          %p135 = pneg %p53
        $region26: #{tpu_custom_call.1} parent=23 // pred_check_branch
          %137 = sbr.rel (%p135) target = $region28
        $region27: #{tpu_custom_call.1} parent=23 // pred_region
          %138 = dma.done %s131, 768
        $region28: #{tpu_custom_call.1} parent=23 // pred_fallthru
          _
        %s139 = sand.u32 %s40, 1
        %s140 = scalar_lea.sflag [#allocation4], %s139
        %s141 = sand.u32 %s40, 1
        %s142 = smul.addr %s141, 48
        %s143 = scalar_lea.vmem [#allocation3], %s142
        %p144 = pneg %p53
        %p145 = pneg %p50
        %p146 = pneg %p81
        %p147 = pneg %p78
        %s148 = sand.u32 %s68, 1
        %s149 = scalar_lea.sflag [#allocation5], %s148
        %s150 = sand.u32 %s68, 1
        %s151 = smul.addr %s150, 96
        %s152 = scalar_lea.vmem [#allocation6], %s151
        %s153 = smul.u32 2, %s23
        %s154 = smul.u32 2, %s23
        %v155 = vld [vmem:[%s134] sm:$0xff]
        %v156 = vld [vmem:[%s134 + $0x8] sm:$0xff]
        %v157 = vld [vmem:[%s134 + $0x10] sm:$0xff]
        %v158 = vld [vmem:[%s134 + $0x18] sm:$0xff]
        %v159 = vld [vmem:[%s134 + $0x20] sm:$0xff]
        %v160 = vld [vmem:[%s134 + $0x28] sm:$0xff]
        %vm161 = vcmask 7168
        %162 = vst.msk [vmem:[#allocation2] sm:$0xff] %vm161, 0.0
        %163 = vst.msk [vmem:[#allocation2 + $0x8] sm:$0xff] %vm161, 0.0
        %vm164 = vcmask 1024
        %165 = vst.msk [vmem:[#allocation2 + $0x10] sm:$0x3] %vm164, 0.0
        %166 = vst.msk [vmem:[#allocation2 + $0x18] sm:$0xff] %vm161, 0.0
        %167 = vst.msk [vmem:[#allocation2 + $0x20] sm:$0xff] %vm161, 0.0
        %168 = vst.msk [vmem:[#allocation2 + $0x28] sm:$0x3] %vm164, 0.0
        %169 = vst.msk [vmem:[#allocation2 + $0x30] sm:$0xff] %vm161, 0.0
        %170 = vst.msk [vmem:[#allocation2 + $0x38] sm:$0xff] %vm161, 0.0
        %171 = vst.msk [vmem:[#allocation2 + $0x40] sm:$0x3] %vm164, 0.0
        %vm172 = vcmask 146568
        %173 = vst.msk [vmem:[#allocation2] sm:$0xff] %vm172, 0.0
        %174 = vst.msk [vmem:[#allocation2 + $0x8] sm:$0xff] %vm172, 0.0
        %vm175 = vcmask 140424
        %176 = vst.msk [vmem:[#allocation2 + $0x10] sm:$0x3] %vm175, 0.0
        %177 = vst.msk [vmem:[#allocation2 + $0x18] sm:$0xff] %vm172, 0.0
        %178 = vst.msk [vmem:[#allocation2 + $0x20] sm:$0xff] %vm172, 0.0
        %179 = vst.msk [vmem:[#allocation2 + $0x28] sm:$0x3] %vm175, 0.0
        %180 = vst.msk [vmem:[#allocation2 + $0x30] sm:$0xff] %vm172, 0.0
        %181 = vst.msk [vmem:[#allocation2 + $0x38] sm:$0xff] %vm172, 0.0
        %182 = vst.msk [vmem:[#allocation2 + $0x40] sm:$0x3] %vm175, 0.0
        %189 = vrot.lane.b32.xlu0 %v155, 1
        %v190 = vpop.permute.xlu0 %189
        %191 = vrot.lane.b32.xlu0 %v156, 1
        %v192 = vpop.permute.xlu0 %191
        %193 = vrot.lane.b32.xlu0 %v157, 1
        %v194 = vpop.permute.xlu0 %193
        %195 = vrot.lane.b32.xlu0 %v158, 1
        %v196 = vpop.permute.xlu0 %195
        %197 = vrot.lane.b32.xlu0 %v159, 1
        %v198 = vpop.permute.xlu0 %197
        %199 = vrot.lane.b32.xlu0 %v160, 1
        %v200 = vpop.permute.xlu0 %199
        %vm207 = vcmask 138248
        %208 = vst.msk [vmem:[#allocation2 + $0x1] sm:$0xff] %vm207, %v190
        %209 = vst.msk [vmem:[#allocation2 + $0x9] sm:$0xff] %vm207, %v192
        %210 = vst.msk [vmem:[#allocation2 + $0x19] sm:$0xff] %vm207, %v194
        %211 = vst.msk [vmem:[#allocation2 + $0x21] sm:$0xff] %vm207, %v196
        %212 = vst.msk [vmem:[#allocation2 + $0x31] sm:$0xff] %vm207, %v198
        %213 = vst.msk [vmem:[#allocation2 + $0x39] sm:$0xff] %vm207, %v200
        %vm214 = vcmask 131080
        %215 = vst.msk [vmem:[#allocation2] sm:$0x1] %vm214, 0.0
        %216 = vst.msk [vmem:[#allocation2 + $0x18] sm:$0x1] %vm214, 0.0
        %217 = vst.msk [vmem:[#allocation2 + $0x30] sm:$0x1] %vm214, 0.0
        %218 = vst.msk [vmem:[#allocation2 + $0x11] sm:$0x1] %vm214, 0.0
        %219 = vst.msk [vmem:[#allocation2 + $0x29] sm:$0x1] %vm214, 0.0
        %220 = vst.msk [vmem:[#allocation2 + $0x41] sm:$0x1] %vm214, 0.0
        %v221 = vld [vmem:[#allocation2] sm:$0xff]
        %v222 = vld [vmem:[#allocation2 + $0x8] sm:$0xff]
        %v223 = vmul.f32 %v221, 2.0
        %v224 = vmul.f32 %v222, 2.0
        %227 = vrot.lane.b32.xlu0 %v223, 127
        %v228 = vpop.permute.xlu0 %227
        %229 = vrot.lane.b32.xlu0 %v224, 127
        %v230 = vpop.permute.xlu0 %229
        %v233 = vadd.f32 %v221, %v228
        %v234 = vadd.f32 %v222, %v230
        %v235 = vsub.f32 0.0, %v221
        %v236 = vsub.f32 0.0, %v222
        %239 = vrot.lane.b32.xlu0 %v235, 126
        %v240 = vpop.permute.xlu0 %239
        %241 = vrot.lane.b32.xlu0 %v236, 126
        %v242 = vpop.permute.xlu0 %241
        %v245 = vadd.f32 %v221, %v240
        %v246 = vadd.f32 %v222, %v242
        %249 = vrot.lane.b32.xlu0 %v221, 126
        %v250 = vpop.permute.xlu0 %249
        %251 = vrot.lane.b32.xlu0 %v222, 126
        %v252 = vpop.permute.xlu0 %251
        %v255 = vadd.f32 %v233, %v250
        %v256 = vadd.f32 %v234, %v252
        %v257 = vld [vmem:[#allocation2 + $0x1] sm:$0xff]
        %v258 = vld [vmem:[#allocation2 + $0x9] sm:$0xff]
        %v259 = vmul.f32 %v257, 2.0
        %v260 = vmul.f32 %v258, 2.0
        %v261 = vadd.f32 %v245, %v259
        %v262 = vadd.f32 %v246, %v260
        %v263 = vmul.f32 %v257, -2.0
        %v264 = vmul.f32 %v258, -2.0
        %267 = vrot.lane.b32.xlu0 %v263, 126
        %v268 = vpop.permute.xlu0 %267
        %269 = vrot.lane.b32.xlu0 %v264, 126
        %v270 = vpop.permute.xlu0 %269
        %v273 = vadd.f32 %v261, %v268
        %v274 = vadd.f32 %v262, %v270
        %v275 = vld [vmem:[#allocation2 + $0x2] sm:$0xff]
        %v276 = vld [vmem:[#allocation2 + $0xa] sm:$0xff]
        %v277 = vadd.f32 %v273, %v275
        %v278 = vadd.f32 %v274, %v276
        %v279 = vsub.f32 0.0, %v275
        %v280 = vsub.f32 0.0, %v276
        %v281 = vadd.f32 %v255, %v279
        %v282 = vadd.f32 %v256, %v280
        %v283 = vmul.f32 %v275, -2.0
        %v284 = vmul.f32 %v276, -2.0
        %287 = vrot.lane.b32.xlu0 %v283, 127
        %v288 = vpop.permute.xlu0 %287
        %289 = vrot.lane.b32.xlu0 %v284, 127
        %v290 = vpop.permute.xlu0 %289
        %v293 = vadd.f32 %v281, %v288
        %v294 = vadd.f32 %v282, %v290
        %297 = vrot.lane.b32.xlu0 %v279, 126
        %v298 = vpop.permute.xlu0 %297
        %299 = vrot.lane.b32.xlu0 %v280, 126
        %v300 = vpop.permute.xlu0 %299
        %v303 = vadd.f32 %v277, %v298
        %v304 = vadd.f32 %v278, %v300
        %v305 = vadd.f32 %v293, %v298
        %v306 = vadd.f32 %v294, %v300
        %vm307 = vcmask 130048
        %308 = vst.msk [vmem:[%s152] sm:$0xff] %vm307, %v303
        %309 = vst.msk [vmem:[%s152 + $0x8] sm:$0xff] %vm307, %v304
        %s310 = scalar_lea.vmem %s152, 16 [#allocation6]
        %311 = vst.msk [vmem:[%s310] sm:$0xff] %vm307, %v305
        %312 = vst.msk [vmem:[%s310 + $0x8] sm:$0xff] %vm307, %v306
        %s313 = scalar_lea.vmem [#allocation2], 24
        %v314 = vld [vmem:[%s313] sm:$0xff]
        %v315 = vld [vmem:[%s313 + $0x8] sm:$0xff]
        %v316 = vmul.f32 %v314, 2.0
        %v317 = vmul.f32 %v315, 2.0
        %320 = vrot.lane.b32.xlu0 %v316, 127
        %v321 = vpop.permute.xlu0 %320
        %322 = vrot.lane.b32.xlu0 %v317, 127
        %v323 = vpop.permute.xlu0 %322
        %v326 = vadd.f32 %v314, %v321
        %v327 = vadd.f32 %v315, %v323
        %v328 = vsub.f32 0.0, %v314
        %v329 = vsub.f32 0.0, %v315
        %332 = vrot.lane.b32.xlu0 %v328, 126
        %v333 = vpop.permute.xlu0 %332
        %334 = vrot.lane.b32.xlu0 %v329, 126
        %v335 = vpop.permute.xlu0 %334
        %v338 = vadd.f32 %v314, %v333
        %v339 = vadd.f32 %v315, %v335
        %342 = vrot.lane.b32.xlu0 %v314, 126
        %v343 = vpop.permute.xlu0 %342
        %344 = vrot.lane.b32.xlu0 %v315, 126
        %v345 = vpop.permute.xlu0 %344
        %v348 = vadd.f32 %v326, %v343
        %v349 = vadd.f32 %v327, %v345
        %v350 = vld [vmem:[%s313 + $0x1] sm:$0xff]
        %v351 = vld [vmem:[%s313 + $0x9] sm:$0xff]
        %v352 = vmul.f32 %v350, 2.0
        %v353 = vmul.f32 %v351, 2.0
        %v354 = vadd.f32 %v338, %v352
        %v355 = vadd.f32 %v339, %v353
        %v356 = vmul.f32 %v350, -2.0
        %v357 = vmul.f32 %v351, -2.0
        %360 = vrot.lane.b32.xlu0 %v356, 126
        %v361 = vpop.permute.xlu0 %360
        %362 = vrot.lane.b32.xlu0 %v357, 126
        %v363 = vpop.permute.xlu0 %362
        %v366 = vadd.f32 %v354, %v361
        %v367 = vadd.f32 %v355, %v363
        %v368 = vld [vmem:[%s313 + $0x2] sm:$0xff]
        %v369 = vld [vmem:[%s313 + $0xa] sm:$0xff]
        %v370 = vadd.f32 %v366, %v368
        %v371 = vadd.f32 %v367, %v369
        %v372 = vsub.f32 0.0, %v368
        %v373 = vsub.f32 0.0, %v369
        %v374 = vadd.f32 %v348, %v372
        %v375 = vadd.f32 %v349, %v373
        %v376 = vmul.f32 %v368, -2.0
        %v377 = vmul.f32 %v369, -2.0
        %380 = vrot.lane.b32.xlu0 %v376, 127
        %v381 = vpop.permute.xlu0 %380
        %382 = vrot.lane.b32.xlu0 %v377, 127
        %v383 = vpop.permute.xlu0 %382
        %v386 = vadd.f32 %v374, %v381
        %v387 = vadd.f32 %v375, %v383
        %390 = vrot.lane.b32.xlu0 %v372, 126
        %v391 = vpop.permute.xlu0 %390
        %392 = vrot.lane.b32.xlu0 %v373, 126
        %v393 = vpop.permute.xlu0 %392
        %v396 = vadd.f32 %v370, %v391
        %v397 = vadd.f32 %v371, %v393
        %v398 = vadd.f32 %v386, %v391
        %v399 = vadd.f32 %v387, %v393
        %s400 = scalar_lea.vmem %s152, 32 [#allocation6]
        %401 = vst.msk [vmem:[%s400] sm:$0xff] %vm307, %v396
        %402 = vst.msk [vmem:[%s400 + $0x8] sm:$0xff] %vm307, %v397
        %s403 = scalar_lea.vmem %s152, 48 [#allocation6]
        %404 = vst.msk [vmem:[%s403] sm:$0xff] %vm307, %v398
        %405 = vst.msk [vmem:[%s403 + $0x8] sm:$0xff] %vm307, %v399
        %s406 = scalar_lea.vmem [#allocation2], 48
        %v407 = vld [vmem:[%s406] sm:$0xff]
        %v408 = vld [vmem:[%s406 + $0x8] sm:$0xff]
        %v409 = vmul.f32 %v407, 2.0
        %v410 = vmul.f32 %v408, 2.0
        %413 = vrot.lane.b32.xlu0 %v409, 127
        %v414 = vpop.permute.xlu0 %413
        %415 = vrot.lane.b32.xlu0 %v410, 127
        %v416 = vpop.permute.xlu0 %415
        %v419 = vadd.f32 %v407, %v414
        %v420 = vadd.f32 %v408, %v416
        %v421 = vsub.f32 0.0, %v407
        %v422 = vsub.f32 0.0, %v408
        %425 = vrot.lane.b32.xlu0 %v421, 126
        %v426 = vpop.permute.xlu0 %425
        %427 = vrot.lane.b32.xlu0 %v422, 126
        %v428 = vpop.permute.xlu0 %427
        %v431 = vadd.f32 %v407, %v426
        %v432 = vadd.f32 %v408, %v428
        %435 = vrot.lane.b32.xlu0 %v407, 126
        %v436 = vpop.permute.xlu0 %435
        %437 = vrot.lane.b32.xlu0 %v408, 126
        %v438 = vpop.permute.xlu0 %437
        %v441 = vadd.f32 %v419, %v436
        %v442 = vadd.f32 %v420, %v438
        %v443 = vld [vmem:[%s406 + $0x1] sm:$0xff]
        %v444 = vld [vmem:[%s406 + $0x9] sm:$0xff]
        %v445 = vmul.f32 %v443, 2.0
        %v446 = vmul.f32 %v444, 2.0
        %v447 = vadd.f32 %v431, %v445
        %v448 = vadd.f32 %v432, %v446
        %v449 = vmul.f32 %v443, -2.0
        %v450 = vmul.f32 %v444, -2.0
        %453 = vrot.lane.b32.xlu0 %v449, 126
        %v454 = vpop.permute.xlu0 %453
        %455 = vrot.lane.b32.xlu0 %v450, 126
        %v456 = vpop.permute.xlu0 %455
        %v459 = vadd.f32 %v447, %v454
        %v460 = vadd.f32 %v448, %v456
        %v461 = vld [vmem:[%s406 + $0x2] sm:$0xff]
        %v462 = vld [vmem:[%s406 + $0xa] sm:$0xff]
        %v463 = vadd.f32 %v459, %v461
        %v464 = vadd.f32 %v460, %v462
        %v465 = vsub.f32 0.0, %v461
        %v466 = vsub.f32 0.0, %v462
        %v467 = vadd.f32 %v441, %v465
        %v468 = vadd.f32 %v442, %v466
        %v469 = vmul.f32 %v461, -2.0
        %v470 = vmul.f32 %v462, -2.0
        %473 = vrot.lane.b32.xlu0 %v469, 127
        %v474 = vpop.permute.xlu0 %473
        %475 = vrot.lane.b32.xlu0 %v470, 127
        %v476 = vpop.permute.xlu0 %475
        %v479 = vadd.f32 %v467, %v474
        %v480 = vadd.f32 %v468, %v476
        %483 = vrot.lane.b32.xlu0 %v465, 126
        %v484 = vpop.permute.xlu0 %483
        %485 = vrot.lane.b32.xlu0 %v466, 126
        %v486 = vpop.permute.xlu0 %485
        %v489 = vadd.f32 %v463, %v484
        %v490 = vadd.f32 %v464, %v486
        %v491 = vadd.f32 %v479, %v484
        %v492 = vadd.f32 %v480, %v486
        %s493 = scalar_lea.vmem %s152, 64 [#allocation6]
        %494 = vst.msk [vmem:[%s493] sm:$0xff] %vm307, %v489
        %495 = vst.msk [vmem:[%s493 + $0x8] sm:$0xff] %vm307, %v490
        %s496 = scalar_lea.vmem %s152, 80 [#allocation6]
        %497 = vst.msk [vmem:[%s496] sm:$0xff] %vm307, %v491
        %498 = vst.msk [vmem:[%s496 + $0x8] sm:$0xff] %vm307, %v492
        %s499 = sand.u32 %s68, 1
        %s500 = scalar_lea.sflag [#allocation5], %s499
        %s501 = sand.u32 %s68, 1
        %s502 = smul.addr %s501, 96
        %s503 = scalar_lea.vmem [#allocation6], %s502
        // Predicated region
        $region29: #{tpu_custom_call.1} parent=23 // pred_check
          %p504 = pneg %p78
        $region30: #{tpu_custom_call.1} parent=23 // pred_check_branch
          %506 = sbr.rel (%p504) target = $region32
        $region31: #{tpu_custom_call.1} parent=23 // pred_region
          %s507 = smul.u32 2, %s23
          %s509 = ssub.s32 1536, 1536
          %510 = vsyncadd %s500, %s509
          %s511 = smul.addr %s22, 12
          %s512 = sadd.s32 %s507, %s511
          %s513 = smul.addr %s512, 128
          %s514 = scalar_lea.hbm %s1, %s513
          %s515 = sshll.u32 %s503, 4
          %s516 = int_to_ptr.vmem [resolvable:$true] %s515
          %521 = dma.vmem_to_hbm [thread:$0]  %s516, 1536, %s514, %s500, 128, 128, 8
        $region32: #{tpu_custom_call.1} parent=23 // pred_fallthru
          _
      $region24: #{tpu_custom_call.1} parent=5 // pred_fallthru
        _
      %p522 = scmp.le.s32.totalorder 2, %s13
      // Predicated region
      $region33: #{tpu_custom_call.1} parent=5 // pred_check
        %p523 = pneg %p522
      $region34: #{tpu_custom_call.1} parent=5 // pred_check_branch
        %525 = sbr.rel (%p523) target = $region36
      $region35: #{tpu_custom_call.1} parent=5 // pred_region
        %s526 = ssub.s32 %s13, 2
        // Predicated region
        $region37: #{tpu_custom_call.1} parent=35 // pred_check
          %p527 = pneg %p84
        $region38: #{tpu_custom_call.1} parent=35 // pred_check_branch
          %529 = sbr.rel (%p527) target = $region40
        $region39: #{tpu_custom_call.1} parent=35 // pred_region
          %s530 = sand.u32 %s69, 1
          %s531 = scalar_lea.sflag [#allocation5], %s530
          %s532 = sand.u32 %s69, 1
          %s533 = smul.addr %s532, 96
          %s534 = scalar_lea.vmem [#allocation6], %s533
          %535 = dma.done %s531, 1536
        $region40: #{tpu_custom_call.1} parent=35 // pred_fallthru
          _
      $region36: #{tpu_custom_call.1} parent=5 // pred_fallthru
        _
    $region6: #{tpu_custom_call.1} parent=1 // loop_footer
      %s17 = sadd.s32 1, %s13
    $region7: #{tpu_custom_call.1} parent=1 // loop_footer_branch
      %12 = sbr.rel target = $region3
    $region8: #{tpu_custom_call.1} parent=1 // loop_exit
      _
    %536 = vsyncpa [#allocation4], 1
    %s537 = scalar_lea.sflag [#allocation4], 1
    %538 = vsyncpa %s537, 1
    %539 = vsyncpa [#allocation5], 1
    %s540 = scalar_lea.sflag [#allocation5], 1
    %541 = vsyncpa %s540, 1

</llo_original>
